<compile_context>
chip_gen: v5e
topology: v5e:2x2
jax: 0.10.0
libtpu: 0.0.40
codegen_flags: <defaults>
</compile_context>

<pallas_src>
import math

import jax
import jax.numpy as jnp
from jax.experimental import pallas as pl
from jax.experimental.pallas import tpu as pltpu

NUM_LAYERS = 3
OUT_DIM = 10
OUT_PAD = 128            # lane-dense output width; real logits live in [:, :OUT_DIM]


def _decoder_mlp_kernel(x_ref,
                        w1a_ref, w1b_ref, b1_ref,
                        wl0_ref, bl0_ref,
                        wl1_ref, bl1_ref,
                        wl2_ref, bl2_ref,
                        wo_ref, bo_ref,
                        o_ref):
    # ---- SMDecoder: reductions over the sequence axis (dim=1) ----
    x = x_ref[...]                                   # (TB, S, D) f32
    out_mean = jnp.mean(x, axis=1)                   # (TB, D)
    out_max = jnp.max(x, axis=1)                     # (TB, D)

    # TODO(synk): nn.Dropout(p=drop_p) is identity for drop_p=0.0 (default); no RNG applied.

    # fc1 + ReLU. concat([out_max, out_mean]) @ w1 == out_max @ w1[:D] + out_mean @ w1[D:]
    h = (jnp.dot(out_max, w1a_ref[...], preferred_element_type=jnp.float32)
         + jnp.dot(out_mean, w1b_ref[...], preferred_element_type=jnp.float32)
         + b1_ref[...])
    h = jnp.maximum(h, 0.0)

    # hidden MLP stack: Linear + ReLU, unrolled (num_layers = 3)
    for w_ref, b_ref in ((wl0_ref, bl0_ref), (wl1_ref, bl1_ref), (wl2_ref, bl2_ref)):
        h = jnp.dot(h, w_ref[...], preferred_element_type=jnp.float32) + b_ref[...]
        h = jnp.maximum(h, 0.0)

    # out_layer + tanh. Weights/bias are zero-padded to 128 output lanes so the
    # store is a full, unmasked lane-dense block; padded columns are tanh(0)=0.
    out = jnp.dot(h, wo_ref[...], preferred_element_type=jnp.float32) + bo_ref[...]
    o_ref[...] = jnp.tanh(out)


def _round_up(x, m):
    return ((x + m - 1) // m) * m


def decoder_mlp_forward(sm_hidden, params, *, max_batch_tile=512):
    """sm_hidden: (B, S, D) f32. params: dict of pre-transposed weights/biases."""
    B, S, D = sm_hidden.shape
    H = params["b1"].shape[-1]

    # ---- batch tile: biggest multiple of 8 whose double-buffered input fits budget ----
    in_row_bytes = S * D * 4
    input_budget = 24 * 1024 * 1024                         # for both pipeline buffers
    tb = min(max_batch_tile, max(8, input_budget // (2 * in_row_bytes)))
    tb = max(8, (tb // 8) * 8)
    tb = min(tb, _round_up(B, 8))                           # don't over-pad tiny batches
    b_pad = _round_up(B, tb)
    if b_pad != B:
        sm_hidden = jnp.pad(sm_hidden, ((0, b_pad - B), (0, 0), (0, 0)))
    grid = (b_pad // tb,)

    # ---- split fc1 weights (no in-kernel concat) and pad out_layer to 128 lanes ----
    w1a = params["w1"][:D]                                  # multiplies out_max
    w1b = params["w1"][D:]                                  # multiplies out_mean
    wo_p = jnp.zeros((H, OUT_PAD), jnp.float32).at[:, :OUT_DIM].set(params["wo"])
    bo_p = jnp.zeros((1, OUT_PAD), jnp.float32).at[:, :OUT_DIM].set(params["bo"])

    weight_args = (w1a, w1b, params["b1"],
                   params["wl0"], params["bl0"],
                   params["wl1"], params["bl1"],
                   params["wl2"], params["bl2"],
                   wo_p, bo_p)

    const_map = lambda i: (0, 0)                            # weights: same block every step
    in_specs = [pl.BlockSpec((tb, S, D), lambda i: (i, 0, 0))]
    in_specs += [pl.BlockSpec(tuple(w.shape), const_map) for w in weight_args]
    out_spec = pl.BlockSpec((tb, OUT_PAD), lambda i: (i, 0))

    # ---- VMEM budget / cost hints ----
    weight_bytes = sum(math.prod(w.shape) * 4 for w in weight_args)
    needed = (2 * tb * S * D * 4          # double-buffered input stream
              + 2 * tb * OUT_PAD * 4      # double-buffered output
              + 2 * weight_bytes          # resident weights (conservative x2)
              + (2 << 20))                # slack
    vmem_limit = int(min(max(needed, 16 * 1024 * 1024), 56 * 1024 * 1024))

    cost = pl.CostEstimate(
        flops=2 * b_pad * (2 * D * H + NUM_LAYERS * H * H + H * OUT_PAD)
              + 2 * b_pad * S * D,
        transcendentals=b_pad * OUT_PAD,
        bytes_accessed=b_pad * S * D * 4 + b_pad * OUT_PAD * 4 + weight_bytes,
    )

    out = pl.pallas_call(
        _decoder_mlp_kernel,
        out_shape=jax.ShapeDtypeStruct((b_pad, OUT_PAD), jnp.float32),
        grid_spec=pltpu.PrefetchScalarGridSpec(
            num_scalar_prefetch=0,
            grid=grid,
            in_specs=in_specs,
            out_specs=out_spec,
        ),
        compiler_params=pltpu.CompilerParams(
            dimension_semantics=("parallel",),
            vmem_limit_bytes=vmem_limit,
        ),
        cost_estimate=cost,
    )(sm_hidden, *weight_args)

    return out[:B, :OUT_DIM]


def _linear_init(key, fan_in, fan_out):
    """PyTorch nn.Linear default init: U(-1/sqrt(fan_in), 1/sqrt(fan_in)).

    Returns weight already transposed to (fan_in, fan_out) and bias as (1, fan_out).
    """
    kw, kb = jax.random.split(key)
    bound = 1.0 / jnp.sqrt(jnp.float32(fan_in))
    w = jax.random.uniform(kw, (fan_in, fan_out), jnp.float32, -bound, bound)
    b = jax.random.uniform(kb, (1, fan_out), jnp.float32, -bound, bound)
    return w, b


def init_decoder_mlp_params(key, hidden_size, sm_hidden_dim):
    keys = jax.random.split(key, NUM_LAYERS + 2)
    params = {}
    # SMDecoder.fc1 : Linear(2 * sm_hidden_dim -> hidden_size)
    params["w1"], params["b1"] = _linear_init(keys[0], 2 * sm_hidden_dim, hidden_size)
    # hidden layers : Linear(hidden_size -> hidden_size) x num_layers
    for i in range(NUM_LAYERS):
        w, b = _linear_init(keys[1 + i], hidden_size, hidden_size)
        params[f"wl{i}"] = w
        params[f"bl{i}"] = b
    # out_layer : Linear(hidden_size -> 10)
    params["wo"], params["bo"] = _linear_init(keys[-1], hidden_size, OUT_DIM)
    return params


def _reference_forward(sm_hidden, params):
    """Pure-JAX reference for a sanity check."""
    out_mean = jnp.mean(sm_hidden, axis=1)
    out_max = jnp.max(sm_hidden, axis=1)
    feat = jnp.concatenate([out_max, out_mean], axis=-1)
    h = jax.nn.relu(feat @ params["w1"] + params["b1"])
    for i in range(NUM_LAYERS):
        h = jax.nn.relu(h @ params[f"wl{i}"] + params[f"bl{i}"])
    return jnp.tanh(h @ params["wo"] + params["bo"])


if __name__ == "__main__":
    # Small, module-consistent shapes: batch=2, seq=8, sm_hidden_dim=32, hidden_size=32.
    B, S, SM_HIDDEN_DIM, HIDDEN_SIZE = 2, 8, 32, 32

    key = jax.random.PRNGKey(0)
    k_x, k_p = jax.random.split(key)
    sm_hidden = jax.random.normal(k_x, (B, S, SM_HIDDEN_DIM), jnp.float32)
    params = init_decoder_mlp_params(k_p, HIDDEN_SIZE, SM_HIDDEN_DIM)

    out = decoder_mlp_forward(sm_hidden, params)
    out = jax.block_until_ready(out)

    ref = _reference_forward(sm_hidden, params)
    assert out.shape == (B, OUT_DIM), out.shape
    assert jnp.allclose(out, ref, atol=1e-5, rtol=1e-5), "mismatch vs pure-JAX reference"

    print("KERNEL_OK")
</pallas_src>

<mosaic_0001>
module attributes {stable_mosaic.version = 11 : i64} {
  func.func @_decoder_mlp_kernel(%arg0: i32, %arg1: memref<8x8x32xf32, #tpu.memory_space<vmem>>, %arg2: memref<32x32xf32, #tpu.memory_space<vmem>>, %arg3: memref<32x32xf32, #tpu.memory_space<vmem>>, %arg4: memref<1x32xf32, #tpu.memory_space<vmem>>, %arg5: memref<32x32xf32, #tpu.memory_space<vmem>>, %arg6: memref<1x32xf32, #tpu.memory_space<vmem>>, %arg7: memref<32x32xf32, #tpu.memory_space<vmem>>, %arg8: memref<1x32xf32, #tpu.memory_space<vmem>>, %arg9: memref<32x32xf32, #tpu.memory_space<vmem>>, %arg10: memref<1x32xf32, #tpu.memory_space<vmem>>, %arg11: memref<32x128xf32, #tpu.memory_space<vmem>>, %arg12: memref<1x128xf32, #tpu.memory_space<vmem>>, %arg13: memref<8x128xf32, #tpu.memory_space<vmem>>) attributes {dimension_semantics = [#tpu.dimension_semantics<parallel>], iteration_bounds = array<i64: 1>, scalar_prefetch = 0 : i64, scratch_operands = 0 : i64, tpu.core_type = #tpu.core_type<tc>, window_params = [{transform_indices = @transform_0, window_bounds = array<i64: 8, 8, 32>}, {pipeline_mode = #tpu.pipeline_mode<synchronous>, transform_indices = @transform_1, window_bounds = array<i64: 32, 32>}, {pipeline_mode = #tpu.pipeline_mode<synchronous>, transform_indices = @transform_2, window_bounds = array<i64: 32, 32>}, {pipeline_mode = #tpu.pipeline_mode<synchronous>, transform_indices = @transform_3, window_bounds = array<i64: 1, 32>}, {pipeline_mode = #tpu.pipeline_mode<synchronous>, transform_indices = @transform_4, window_bounds = array<i64: 32, 32>}, {pipeline_mode = #tpu.pipeline_mode<synchronous>, transform_indices = @transform_5, window_bounds = array<i64: 1, 32>}, {pipeline_mode = #tpu.pipeline_mode<synchronous>, transform_indices = @transform_6, window_bounds = array<i64: 32, 32>}, {pipeline_mode = #tpu.pipeline_mode<synchronous>, transform_indices = @transform_7, window_bounds = array<i64: 1, 32>}, {pipeline_mode = #tpu.pipeline_mode<synchronous>, transform_indices = @transform_8, window_bounds = array<i64: 32, 32>}, {pipeline_mode = #tpu.pipeline_mode<synchronous>, transform_indices = @transform_9, window_bounds = array<i64: 1, 32>}, {pipeline_mode = #tpu.pipeline_mode<synchronous>, transform_indices = @transform_10, window_bounds = array<i64: 32, 128>}, {pipeline_mode = #tpu.pipeline_mode<synchronous>, transform_indices = @transform_11, window_bounds = array<i64: 1, 128>}, {transform_indices = @transform_12, window_bounds = array<i64: 8, 128>}]} {
    %c0 = arith.constant 0 : index
    %c0_0 = arith.constant 0 : index
    %c0_1 = arith.constant 0 : index
    %0 = vector.load %arg1[%c0, %c0_0, %c0_1] : memref<8x8x32xf32, #tpu.memory_space<vmem>>, vector<8x8x32xf32>
    %cst = arith.constant dense<0.000000e+00> : vector<8x32xf32>
    %1 = vector.multi_reduction <add>, %0, %cst [1] : vector<8x8x32xf32> to vector<8x32xf32>
    %cst_2 = arith.constant 8.000000e+00 : f32
    %2 = vector.broadcast %cst_2 : f32 to vector<8x32xf32>
    %3 = arith.divf %1, %2 : vector<8x32xf32>
    %cst_3 = arith.constant dense<0xFF800000> : vector<8x32xf32>
    %4 = vector.multi_reduction <maximumf>, %0, %cst_3 [1] : vector<8x8x32xf32> to vector<8x32xf32>
    %c0_4 = arith.constant 0 : index
    %c0_5 = arith.constant 0 : index
    %5 = vector.load %arg2[%c0_4, %c0_5] : memref<32x32xf32, #tpu.memory_space<vmem>>, vector<32x32xf32>
    %cst_6 = arith.constant dense<0.000000e+00> : vector<8x32xf32>
    %6 = tpu.matmul %4, %5, %cst_6 {dimension_numbers = #tpu.dot_dimension_numbers<[1], [0], [0], [1], [0, 0, 1, 1], [], []>} : vector<8x32xf32>, vector<32x32xf32>, vector<8x32xf32> -> vector<8x32xf32>
    %c0_7 = arith.constant 0 : index
    %c0_8 = arith.constant 0 : index
    %7 = vector.load %arg3[%c0_7, %c0_8] : memref<32x32xf32, #tpu.memory_space<vmem>>, vector<32x32xf32>
    %cst_9 = arith.constant dense<0.000000e+00> : vector<8x32xf32>
    %8 = tpu.matmul %3, %7, %cst_9 {dimension_numbers = #tpu.dot_dimension_numbers<[1], [0], [0], [1], [0, 0, 1, 1], [], []>} : vector<8x32xf32>, vector<32x32xf32>, vector<8x32xf32> -> vector<8x32xf32>
    %9 = arith.addf %6, %8 : vector<8x32xf32>
    %c0_10 = arith.constant 0 : index
    %c0_11 = arith.constant 0 : index
    %10 = vector.load %arg4[%c0_10, %c0_11] : memref<1x32xf32, #tpu.memory_space<vmem>>, vector<1x32xf32>
    %11 = vector.broadcast %10 : vector<1x32xf32> to vector<8x32xf32>
    %12 = arith.addf %9, %11 : vector<8x32xf32>
    %cst_12 = arith.constant 0.000000e+00 : f32
    %13 = vector.broadcast %cst_12 : f32 to vector<8x32xf32>
    %14 = arith.maximumf %12, %13 : vector<8x32xf32>
    %c0_13 = arith.constant 0 : index
    %c0_14 = arith.constant 0 : index
    %15 = vector.load %arg5[%c0_13, %c0_14] : memref<32x32xf32, #tpu.memory_space<vmem>>, vector<32x32xf32>
    %cst_15 = arith.constant dense<0.000000e+00> : vector<8x32xf32>
    %16 = tpu.matmul %14, %15, %cst_15 {dimension_numbers = #tpu.dot_dimension_numbers<[1], [0], [0], [1], [0, 0, 1, 1], [], []>} : vector<8x32xf32>, vector<32x32xf32>, vector<8x32xf32> -> vector<8x32xf32>
    %c0_16 = arith.constant 0 : index
    %c0_17 = arith.constant 0 : index
    %17 = vector.load %arg6[%c0_16, %c0_17] : memref<1x32xf32, #tpu.memory_space<vmem>>, vector<1x32xf32>
    %18 = vector.broadcast %17 : vector<1x32xf32> to vector<8x32xf32>
    %19 = arith.addf %16, %18 : vector<8x32xf32>
    %cst_18 = arith.constant 0.000000e+00 : f32
    %20 = vector.broadcast %cst_18 : f32 to vector<8x32xf32>
    %21 = arith.maximumf %19, %20 : vector<8x32xf32>
    %c0_19 = arith.constant 0 : index
    %c0_20 = arith.constant 0 : index
    %22 = vector.load %arg7[%c0_19, %c0_20] : memref<32x32xf32, #tpu.memory_space<vmem>>, vector<32x32xf32>
    %cst_21 = arith.constant dense<0.000000e+00> : vector<8x32xf32>
    %23 = tpu.matmul %21, %22, %cst_21 {dimension_numbers = #tpu.dot_dimension_numbers<[1], [0], [0], [1], [0, 0, 1, 1], [], []>} : vector<8x32xf32>, vector<32x32xf32>, vector<8x32xf32> -> vector<8x32xf32>
    %c0_22 = arith.constant 0 : index
    %c0_23 = arith.constant 0 : index
    %24 = vector.load %arg8[%c0_22, %c0_23] : memref<1x32xf32, #tpu.memory_space<vmem>>, vector<1x32xf32>
    %25 = vector.broadcast %24 : vector<1x32xf32> to vector<8x32xf32>
    %26 = arith.addf %23, %25 : vector<8x32xf32>
    %cst_24 = arith.constant 0.000000e+00 : f32
    %27 = vector.broadcast %cst_24 : f32 to vector<8x32xf32>
    %28 = arith.maximumf %26, %27 : vector<8x32xf32>
    %c0_25 = arith.constant 0 : index
    %c0_26 = arith.constant 0 : index
    %29 = vector.load %arg9[%c0_25, %c0_26] : memref<32x32xf32, #tpu.memory_space<vmem>>, vector<32x32xf32>
    %cst_27 = arith.constant dense<0.000000e+00> : vector<8x32xf32>
    %30 = tpu.matmul %28, %29, %cst_27 {dimension_numbers = #tpu.dot_dimension_numbers<[1], [0], [0], [1], [0, 0, 1, 1], [], []>} : vector<8x32xf32>, vector<32x32xf32>, vector<8x32xf32> -> vector<8x32xf32>
    %c0_28 = arith.constant 0 : index
    %c0_29 = arith.constant 0 : index
    %31 = vector.load %arg10[%c0_28, %c0_29] : memref<1x32xf32, #tpu.memory_space<vmem>>, vector<1x32xf32>
    %32 = vector.broadcast %31 : vector<1x32xf32> to vector<8x32xf32>
    %33 = arith.addf %30, %32 : vector<8x32xf32>
    %cst_30 = arith.constant 0.000000e+00 : f32
    %34 = vector.broadcast %cst_30 : f32 to vector<8x32xf32>
    %35 = arith.maximumf %33, %34 : vector<8x32xf32>
    %c0_31 = arith.constant 0 : index
    %c0_32 = arith.constant 0 : index
    %36 = vector.load %arg11[%c0_31, %c0_32] : memref<32x128xf32, #tpu.memory_space<vmem>>, vector<32x128xf32>
    %cst_33 = arith.constant dense<0.000000e+00> : vector<8x128xf32>
    %37 = tpu.matmul %35, %36, %cst_33 {dimension_numbers = #tpu.dot_dimension_numbers<[1], [0], [0], [1], [0, 0, 1, 1], [], []>} : vector<8x32xf32>, vector<32x128xf32>, vector<8x128xf32> -> vector<8x128xf32>
    %c0_34 = arith.constant 0 : index
    %c0_35 = arith.constant 0 : index
    %38 = vector.load %arg12[%c0_34, %c0_35] : memref<1x128xf32, #tpu.memory_space<vmem>>, vector<1x128xf32>
    %39 = vector.broadcast %38 : vector<1x128xf32> to vector<8x128xf32>
    %40 = arith.addf %37, %39 : vector<8x128xf32>
    %41 = math.tanh %40 : vector<8x128xf32>
    %c0_36 = arith.constant 0 : index
    %c0_37 = arith.constant 0 : index
    %42 = vector.load %arg13[%c0_36, %c0_37] : memref<8x128xf32, #tpu.memory_space<vmem>>, vector<8x128xf32>
    tpu.vector_store %arg13[%c0_36, %c0_37], %41 {strides = array<i32>} : memref<8x128xf32, #tpu.memory_space<vmem>>, vector<8x128xf32>,
    return
  }
  func.func @transform_0(%arg0: i32) -> (i32, i32, i32) {
    %c0_i32 = arith.constant 0 : i32
    %c0_i32_0 = arith.constant 0 : i32
    %c0_i32_1 = arith.constant 0 : i32
    return %arg0, %c0_i32, %c0_i32_0 : i32, i32, i32
  }
  func.func @transform_1(%arg0: i32) -> (i32, i32) {
    %c0_i32 = arith.constant 0 : i32
    %c0_i32_0 = arith.constant 0 : i32
    %c0_i32_1 = arith.constant 0 : i32
    return %c0_i32, %c0_i32_0 : i32, i32
  }
  func.func @transform_2(%arg0: i32) -> (i32, i32) {
    %c0_i32 = arith.constant 0 : i32
    %c0_i32_0 = arith.constant 0 : i32
    %c0_i32_1 = arith.constant 0 : i32
    return %c0_i32, %c0_i32_0 : i32, i32
  }
  func.func @transform_3(%arg0: i32) -> (i32, i32) {
    %c0_i32 = arith.constant 0 : i32
    %c0_i32_0 = arith.constant 0 : i32
    %c0_i32_1 = arith.constant 0 : i32
    return %c0_i32, %c0_i32_0 : i32, i32
  }
  func.func @transform_4(%arg0: i32) -> (i32, i32) {
    %c0_i32 = arith.constant 0 : i32
    %c0_i32_0 = arith.constant 0 : i32
    %c0_i32_1 = arith.constant 0 : i32
    return %c0_i32, %c0_i32_0 : i32, i32
  }
  func.func @transform_5(%arg0: i32) -> (i32, i32) {
    %c0_i32 = arith.constant 0 : i32
    %c0_i32_0 = arith.constant 0 : i32
    %c0_i32_1 = arith.constant 0 : i32
    return %c0_i32, %c0_i32_0 : i32, i32
  }
  func.func @transform_6(%arg0: i32) -> (i32, i32) {
    %c0_i32 = arith.constant 0 : i32
    %c0_i32_0 = arith.constant 0 : i32
    %c0_i32_1 = arith.constant 0 : i32
    return %c0_i32, %c0_i32_0 : i32, i32
  }
  func.func @transform_7(%arg0: i32) -> (i32, i32) {
    %c0_i32 = arith.constant 0 : i32
    %c0_i32_0 = arith.constant 0 : i32
    %c0_i32_1 = arith.constant 0 : i32
    return %c0_i32, %c0_i32_0 : i32, i32
  }
  func.func @transform_8(%arg0: i32) -> (i32, i32) {
    %c0_i32 = arith.constant 0 : i32
    %c0_i32_0 = arith.constant 0 : i32
    %c0_i32_1 = arith.constant 0 : i32
    return %c0_i32, %c0_i32_0 : i32, i32
  }
  func.func @transform_9(%arg0: i32) -> (i32, i32) {
    %c0_i32 = arith.constant 0 : i32
    %c0_i32_0 = arith.constant 0 : i32
    %c0_i32_1 = arith.constant 0 : i32
    return %c0_i32, %c0_i32_0 : i32, i32
  }
  func.func @transform_10(%arg0: i32) -> (i32, i32) {
    %c0_i32 = arith.constant 0 : i32
    %c0_i32_0 = arith.constant 0 : i32
    %c0_i32_1 = arith.constant 0 : i32
    return %c0_i32, %c0_i32_0 : i32, i32
  }
  func.func @transform_11(%arg0: i32) -> (i32, i32) {
    %c0_i32 = arith.constant 0 : i32
    %c0_i32_0 = arith.constant 0 : i32
    %c0_i32_1 = arith.constant 0 : i32
    return %c0_i32, %c0_i32_0 : i32, i32
  }
  func.func @transform_12(%arg0: i32) -> (i32, i32) {
    %c0_i32 = arith.constant 0 : i32
    %c0_i32_0 = arith.constant 0 : i32
    return %arg0, %c0_i32 : i32, i32
  }
}

</mosaic_0001>

<llo_original>
// kernel: tpu_custom_call.1
$region0: #{tpu_custom_call.1}
  #allocation0 [shape = 'u32[]', space=smem, size = 0x4, offset = 0x4, fixed_abs, tag = 'smem constant byte address 0x4 - core index']
  #allocation1 [shape = 'u32[72,128]{1,0:T(1,128)}', space=vmem, size = 0x9000, scoped, tag = 'internal scratch']
  %s0 = inlined_call_operand.hbm [shape: f32[8,8,32], index: 0, kind: input, shape index: {}]
  %s1 = inlined_call_operand.hbm [shape: f32[32,32], index: 1, kind: input, shape index: {}]
  %s2 = inlined_call_operand.hbm [shape: f32[32,32], index: 2, kind: input, shape index: {}]
  %s3 = inlined_call_operand.vmem [shape: f32[1,32], index: 3, kind: input, shape index: {}]
  %s4 = inlined_call_operand.hbm [shape: f32[32,32], index: 4, kind: input, shape index: {}]
  %s5 = inlined_call_operand.vmem [shape: f32[1,32], index: 5, kind: input, shape index: {}]
  %s6 = inlined_call_operand.hbm [shape: f32[32,32], index: 6, kind: input, shape index: {}]
  %s7 = inlined_call_operand.vmem [shape: f32[1,32], index: 7, kind: input, shape index: {}]
  %s8 = inlined_call_operand.hbm [shape: f32[32,32], index: 8, kind: input, shape index: {}]
  %s9 = inlined_call_operand.vmem [shape: f32[1,32], index: 9, kind: input, shape index: {}]
  %s10 = inlined_call_operand.hbm [shape: f32[32,128], index: 10, kind: input, shape index: {}]
  %s11 = inlined_call_operand.vmem [shape: f32[1,128], index: 11, kind: input, shape index: {}]
  %s12 = inlined_call_operand.hbm [shape: f32[8,128], index: 12, kind: output, shape index: {}]
  %s13 = sld [smem:[#allocation0]]
  $region86: #{tpu_custom_call.1} parent=0
    _
  %s15 = ssub.s32 1, %s13
  %s16 = scalar_select 0, %s15, %s13
  $region1: #{tpu_custom_call.1} parent=0
    #allocation2 [shape = 'u8[32768]{0}', space=vmem, size = 0x8000, scoped, tag = 'input window, operand 0, single buffered']
    #allocation3 [shape = 's32[1]{0}', space=sflag, size = 0x4, scoped, tag = 'scoped memory for tpu_custom_call.1']
    #allocation4 [shape = 's32[1]{0}', space=sflag, size = 0x4, scoped, tag = 'scoped memory for tpu_custom_call.1']
    #allocation5 [shape = 'u8[16384]{0}', space=vmem, size = 0x4000, scoped, tag = 'input window, operand 1, single buffered']
    #allocation6 [shape = 's32[1]{0}', space=sflag, size = 0x4, scoped, tag = 'scoped memory for tpu_custom_call.1']
    #allocation7 [shape = 'u8[16384]{0}', space=vmem, size = 0x4000, scoped, tag = 'input window, operand 2, single buffered']
    #allocation8 [shape = 'u8[16384]{0}', space=vmem, size = 0x4000, scoped, tag = 'input window, operand 4, single buffered']
    #allocation9 [shape = 's32[1]{0}', space=sflag, size = 0x4, scoped, tag = 'scoped memory for tpu_custom_call.1']
    #allocation10 [shape = 'u8[16384]{0}', space=vmem, size = 0x4000, scoped, tag = 'input window, operand 6, single buffered']
    #allocation11 [shape = 'u8[16384]{0}', space=vmem, size = 0x4000, scoped, tag = 'input window, operand 8, single buffered']
    #allocation12 [shape = 's32[1]{0}', space=sflag, size = 0x4, scoped, tag = 'scoped memory for tpu_custom_call.1']
    #allocation13 [shape = 'u8[16384]{0}', space=vmem, size = 0x4000, scoped, tag = 'input window, operand 10, single buffered']
    #allocation14 [shape = 'u8[4096]{0}', space=vmem, size = 0x1000, scoped, tag = 'output window, operand 0, single buffered']
    %17 = vsyncpa [#allocation3], 0
    %18 = vsyncpa [#allocation6], 0
    %19 = vsyncpa [#allocation9], 0
    %20 = vsyncpa [#allocation12], 0
    %21 = vsyncpa [#allocation4], 0
    // Predicated region
    $region2: #{tpu_custom_call.1} parent=1 // pred_check
      _
    $region3: #{tpu_custom_call.1} parent=1 // pred_check_branch
      %23 = sbr.rel (0) target = $region5
    $region4: #{tpu_custom_call.1} parent=1 // pred_region
      %25 = vsyncadd [#allocation3], 0
      %s26 = sshll.u32 %s0, 4
      %s27 = int_to_ptr.hbm [resolvable:$true] %s26
      %s28 = sshll.u32 [#allocation2], 4
      %s29 = int_to_ptr.vmem [resolvable:$true] %s28
      %34 = dma.hbm_to_vmem [thread:$0]  %s27, 1024, %s29, [#allocation3], 128, 128, 8
    $region5: #{tpu_custom_call.1} parent=1 // pred_fallthru
      _
    // Predicated region
    $region6: #{tpu_custom_call.1} parent=1 // pred_check
      _
    $region7: #{tpu_custom_call.1} parent=1 // pred_check_branch
      %36 = sbr.rel (0) target = $region9
    $region8: #{tpu_custom_call.1} parent=1 // pred_region
      %38 = vsyncadd [#allocation6], 0
      %s39 = sshll.u32 %s1, 4
      %s40 = int_to_ptr.hbm [resolvable:$true] %s39
      %s41 = sshll.u32 [#allocation5], 4
      %s42 = int_to_ptr.vmem [resolvable:$true] %s41
      %47 = dma.hbm_to_vmem [thread:$0]  %s40, 512, %s42, [#allocation6], 128, 128, 8
    $region9: #{tpu_custom_call.1} parent=1 // pred_fallthru
      _
    // Predicated region
    $region10: #{tpu_custom_call.1} parent=1 // pred_check
      _
    $region11: #{tpu_custom_call.1} parent=1 // pred_check_branch
      %49 = sbr.rel (0) target = $region13
    $region12: #{tpu_custom_call.1} parent=1 // pred_region
      %51 = vsyncadd [#allocation6], 0
      %s52 = sshll.u32 %s2, 4
      %s53 = int_to_ptr.hbm [resolvable:$true] %s52
      %s54 = sshll.u32 [#allocation7], 4
      %s55 = int_to_ptr.vmem [resolvable:$true] %s54
      %60 = dma.hbm_to_vmem [thread:$0]  %s53, 512, %s55, [#allocation6], 128, 128, 8
    $region13: #{tpu_custom_call.1} parent=1 // pred_fallthru
      _
    // Predicated region
    $region14: #{tpu_custom_call.1} parent=1 // pred_check
      _
    $region15: #{tpu_custom_call.1} parent=1 // pred_check_branch
      %62 = sbr.rel (0) target = $region17
    $region16: #{tpu_custom_call.1} parent=1 // pred_region
      _
    $region17: #{tpu_custom_call.1} parent=1 // pred_fallthru
      _
    // Predicated region
    $region18: #{tpu_custom_call.1} parent=1 // pred_check
      _
    $region19: #{tpu_custom_call.1} parent=1 // pred_check_branch
      %64 = sbr.rel (0) target = $region21
    $region20: #{tpu_custom_call.1} parent=1 // pred_region
      %66 = vsyncadd [#allocation9], 0
      %s67 = sshll.u32 %s4, 4
      %s68 = int_to_ptr.hbm [resolvable:$true] %s67
      %s69 = sshll.u32 [#allocation8], 4
      %s70 = int_to_ptr.vmem [resolvable:$true] %s69
      %75 = dma.hbm_to_vmem [thread:$0]  %s68, 512, %s70, [#allocation9], 128, 128, 8
    $region21: #{tpu_custom_call.1} parent=1 // pred_fallthru
      _
    // Predicated region
    $region22: #{tpu_custom_call.1} parent=1 // pred_check
      _
    $region23: #{tpu_custom_call.1} parent=1 // pred_check_branch
      %77 = sbr.rel (0) target = $region25
    $region24: #{tpu_custom_call.1} parent=1 // pred_region
      _
    $region25: #{tpu_custom_call.1} parent=1 // pred_fallthru
      _
    // Predicated region
    $region26: #{tpu_custom_call.1} parent=1 // pred_check
      _
    $region27: #{tpu_custom_call.1} parent=1 // pred_check_branch
      %79 = sbr.rel (0) target = $region29
    $region28: #{tpu_custom_call.1} parent=1 // pred_region
      %81 = vsyncadd [#allocation9], 0
      %s82 = sshll.u32 %s6, 4
      %s83 = int_to_ptr.hbm [resolvable:$true] %s82
      %s84 = sshll.u32 [#allocation10], 4
      %s85 = int_to_ptr.vmem [resolvable:$true] %s84
      %90 = dma.hbm_to_vmem [thread:$0]  %s83, 512, %s85, [#allocation9], 128, 128, 8
    $region29: #{tpu_custom_call.1} parent=1 // pred_fallthru
      _
    // Predicated region
    $region30: #{tpu_custom_call.1} parent=1 // pred_check
      _
    $region31: #{tpu_custom_call.1} parent=1 // pred_check_branch
      %92 = sbr.rel (0) target = $region33
    $region32: #{tpu_custom_call.1} parent=1 // pred_region
      _
    $region33: #{tpu_custom_call.1} parent=1 // pred_fallthru
      _
    // Predicated region
    $region34: #{tpu_custom_call.1} parent=1 // pred_check
      _
    $region35: #{tpu_custom_call.1} parent=1 // pred_check_branch
      %94 = sbr.rel (0) target = $region37
    $region36: #{tpu_custom_call.1} parent=1 // pred_region
      %96 = vsyncadd [#allocation12], 0
      %s97 = sshll.u32 %s8, 4
      %s98 = int_to_ptr.hbm [resolvable:$true] %s97
      %s99 = sshll.u32 [#allocation11], 4
      %s100 = int_to_ptr.vmem [resolvable:$true] %s99
      %105 = dma.hbm_to_vmem [thread:$0]  %s98, 512, %s100, [#allocation12], 128, 128, 8
    $region37: #{tpu_custom_call.1} parent=1 // pred_fallthru
      _
    // Predicated region
    $region38: #{tpu_custom_call.1} parent=1 // pred_check
      _
    $region39: #{tpu_custom_call.1} parent=1 // pred_check_branch
      %107 = sbr.rel (0) target = $region41
    $region40: #{tpu_custom_call.1} parent=1 // pred_region
      _
    $region41: #{tpu_custom_call.1} parent=1 // pred_fallthru
      _
    // Predicated region
    $region42: #{tpu_custom_call.1} parent=1 // pred_check
      _
    $region43: #{tpu_custom_call.1} parent=1 // pred_check_branch
      %109 = sbr.rel (0) target = $region45
    $region44: #{tpu_custom_call.1} parent=1 // pred_region
      %111 = vsyncadd [#allocation12], 0
      %s112 = sshll.u32 %s10, 4
      %s113 = int_to_ptr.hbm [resolvable:$true] %s112
      %s114 = sshll.u32 [#allocation13], 4
      %s115 = int_to_ptr.vmem [resolvable:$true] %s114
      %120 = dma.hbm_to_vmem [thread:$0]  %s113, 512, %s115, [#allocation12], 128, 128, 8
    $region45: #{tpu_custom_call.1} parent=1 // pred_fallthru
      _
    // Predicated region
    $region46: #{tpu_custom_call.1} parent=1 // pred_check
      _
    $region47: #{tpu_custom_call.1} parent=1 // pred_check_branch
      %122 = sbr.rel (0) target = $region49
    $region48: #{tpu_custom_call.1} parent=1 // pred_region
      _
    $region49: #{tpu_custom_call.1} parent=1 // pred_fallthru
      _
    // Predicated region
    $region50: #{tpu_custom_call.1} parent=1 // pred_check
      _
    $region51: #{tpu_custom_call.1} parent=1 // pred_check_branch
      %124 = sbr.rel (0) target = $region53
    $region52: #{tpu_custom_call.1} parent=1 // pred_region
      %126 = dma.done [#allocation3], 1024
    $region53: #{tpu_custom_call.1} parent=1 // pred_fallthru
      _
    // Predicated region
    $region54: #{tpu_custom_call.1} parent=1 // pred_check
      _
    $region55: #{tpu_custom_call.1} parent=1 // pred_check_branch
      %128 = sbr.rel (0) target = $region57
    $region56: #{tpu_custom_call.1} parent=1 // pred_region
      %130 = dma.done [#allocation6], 512
    $region57: #{tpu_custom_call.1} parent=1 // pred_fallthru
      _
    // Predicated region
    $region58: #{tpu_custom_call.1} parent=1 // pred_check
      _
    $region59: #{tpu_custom_call.1} parent=1 // pred_check_branch
      %132 = sbr.rel (0) target = $region61
    $region60: #{tpu_custom_call.1} parent=1 // pred_region
      %134 = dma.done [#allocation6], 512
    $region61: #{tpu_custom_call.1} parent=1 // pred_fallthru
      _
    // Predicated region
    $region62: #{tpu_custom_call.1} parent=1 // pred_check
      _
    $region63: #{tpu_custom_call.1} parent=1 // pred_check_branch
      %136 = sbr.rel (0) target = $region65
    $region64: #{tpu_custom_call.1} parent=1 // pred_region
      %138 = dma.done [#allocation9], 512
    $region65: #{tpu_custom_call.1} parent=1 // pred_fallthru
      _
    // Predicated region
    $region66: #{tpu_custom_call.1} parent=1 // pred_check
      _
    $region67: #{tpu_custom_call.1} parent=1 // pred_check_branch
      %140 = sbr.rel (0) target = $region69
    $region68: #{tpu_custom_call.1} parent=1 // pred_region
      %142 = dma.done [#allocation9], 512
    $region69: #{tpu_custom_call.1} parent=1 // pred_fallthru
      _
    // Predicated region
    $region70: #{tpu_custom_call.1} parent=1 // pred_check
      _
    $region71: #{tpu_custom_call.1} parent=1 // pred_check_branch
      %144 = sbr.rel (0) target = $region73
    $region72: #{tpu_custom_call.1} parent=1 // pred_region
      %146 = dma.done [#allocation12], 512
    $region73: #{tpu_custom_call.1} parent=1 // pred_fallthru
      _
    // Predicated region
    $region74: #{tpu_custom_call.1} parent=1 // pred_check
      _
    $region75: #{tpu_custom_call.1} parent=1 // pred_check_branch
      %148 = sbr.rel (0) target = $region77
    $region76: #{tpu_custom_call.1} parent=1 // pred_region
      %150 = dma.done [#allocation12], 512
    $region77: #{tpu_custom_call.1} parent=1 // pred_fallthru
      _
    %v151 = vld [vmem:[#allocation2] sm:$0xff]
    %v152 = vld [vmem:[#allocation2 + $0x8] sm:$0xff]
    %v153 = vld [vmem:[#allocation2 + $0x10] sm:$0xff]
    %v154 = vld [vmem:[#allocation2 + $0x18] sm:$0xff]
    %v155 = vld [vmem:[#allocation2 + $0x20] sm:$0xff]
    %v156 = vld [vmem:[#allocation2 + $0x28] sm:$0xff]
    %v157 = vld [vmem:[#allocation2 + $0x30] sm:$0xff]
    %v158 = vld [vmem:[#allocation2 + $0x38] sm:$0xff]
    %vm159 = vcmask 261120
    %v160 = vsel %vm159, %v151, 0.0
    %v161 = vrot.slane %v160, 4
    %v162 = vadd.f32 %v160, %v161
    %v163 = vrot.slane %v162, 2
    %v164 = vadd.f32 %v162, %v163
    %v165 = vrot.slane %v164, 1
    %v166 = vadd.f32 %v164, %v165
    %v167 = vsel %vm159, %v152, 0.0
    %v168 = vrot.slane %v167, 4
    %v169 = vadd.f32 %v167, %v168
    %v170 = vrot.slane %v169, 2
    %v171 = vadd.f32 %v169, %v170
    %v172 = vrot.slane %v171, 1
    %v173 = vadd.f32 %v171, %v172
    %v174 = vsel %vm159, %v153, 0.0
    %v175 = vrot.slane %v174, 4
    %v176 = vadd.f32 %v174, %v175
    %v177 = vrot.slane %v176, 2
    %v178 = vadd.f32 %v176, %v177
    %v179 = vrot.slane %v178, 1
    %v180 = vadd.f32 %v178, %v179
    %v181 = vsel %vm159, %v154, 0.0
    %v182 = vrot.slane %v181, 4
    %v183 = vadd.f32 %v181, %v182
    %v184 = vrot.slane %v183, 2
    %v185 = vadd.f32 %v183, %v184
    %v186 = vrot.slane %v185, 1
    %v187 = vadd.f32 %v185, %v186
    %v188 = vsel %vm159, %v155, 0.0
    %v189 = vrot.slane %v188, 4
    %v190 = vadd.f32 %v188, %v189
    %v191 = vrot.slane %v190, 2
    %v192 = vadd.f32 %v190, %v191
    %v193 = vrot.slane %v192, 1
    %v194 = vadd.f32 %v192, %v193
    %v195 = vsel %vm159, %v156, 0.0
    %v196 = vrot.slane %v195, 4
    %v197 = vadd.f32 %v195, %v196
    %v198 = vrot.slane %v197, 2
    %v199 = vadd.f32 %v197, %v198
    %v200 = vrot.slane %v199, 1
    %v201 = vadd.f32 %v199, %v200
    %v202 = vsel %vm159, %v157, 0.0
    %v203 = vrot.slane %v202, 4
    %v204 = vadd.f32 %v202, %v203
    %v205 = vrot.slane %v204, 2
    %v206 = vadd.f32 %v204, %v205
    %v207 = vrot.slane %v206, 1
    %v208 = vadd.f32 %v206, %v207
    %v209 = vsel %vm159, %v158, 0.0
    %v210 = vrot.slane %v209, 4
    %v211 = vadd.f32 %v209, %v210
    %v212 = vrot.slane %v211, 2
    %v213 = vadd.f32 %v211, %v212
    %v214 = vrot.slane %v213, 1
    %v215 = vadd.f32 %v213, %v214
    %v216 = vrcp.pop 8.0
    %v217 = vmul.f32 8.0, %v216
    %v218 = vsub.f32 1.0, %v217
    %v219 = vmul.f32 %v216, %v218
    %v220 = vadd.f32 %v216, %v219
    %vm221 = vweird.f32 %v216
    %v222 = vsel %vm221, %v216, %v220
    %v223 = vmul.f32 %v166, %v222
    %v224 = vmul.f32 %v173, %v222
    %v225 = vmul.f32 %v180, %v222
    %v226 = vmul.f32 %v187, %v222
    %v227 = vmul.f32 %v194, %v222
    %v228 = vmul.f32 %v201, %v222
    %v229 = vmul.f32 %v208, %v222
    %v230 = vmul.f32 %v215, %v222
    %v231 = vsel %vm159, %v151, -inf
    %v232 = vrot.slane %v231, 4
    %v233 = vmax.f32 %v231, %v232
    %v234 = vrot.slane %v233, 2
    %v235 = vmax.f32 %v233, %v234
    %v236 = vrot.slane %v235, 1
    %v237 = vmax.f32 %v235, %v236
    %v238 = vsel %vm159, %v152, -inf
    %v239 = vrot.slane %v238, 4
    %v240 = vmax.f32 %v238, %v239
    %v241 = vrot.slane %v240, 2
    %v242 = vmax.f32 %v240, %v241
    %v243 = vrot.slane %v242, 1
    %v244 = vmax.f32 %v242, %v243
    %v245 = vsel %vm159, %v153, -inf
    %v246 = vrot.slane %v245, 4
    %v247 = vmax.f32 %v245, %v246
    %v248 = vrot.slane %v247, 2
    %v249 = vmax.f32 %v247, %v248
    %v250 = vrot.slane %v249, 1
    %v251 = vmax.f32 %v249, %v250
    %v252 = vsel %vm159, %v154, -inf
    %v253 = vrot.slane %v252, 4
    %v254 = vmax.f32 %v252, %v253
    %v255 = vrot.slane %v254, 2
    %v256 = vmax.f32 %v254, %v255
    %v257 = vrot.slane %v256, 1
    %v258 = vmax.f32 %v256, %v257
    %v259 = vsel %vm159, %v155, -inf
    %v260 = vrot.slane %v259, 4
    %v261 = vmax.f32 %v259, %v260
    %v262 = vrot.slane %v261, 2
    %v263 = vmax.f32 %v261, %v262
    %v264 = vrot.slane %v263, 1
    %v265 = vmax.f32 %v263, %v264
    %v266 = vsel %vm159, %v156, -inf
    %v267 = vrot.slane %v266, 4
    %v268 = vmax.f32 %v266, %v267
    %v269 = vrot.slane %v268, 2
    %v270 = vmax.f32 %v268, %v269
    %v271 = vrot.slane %v270, 1
    %v272 = vmax.f32 %v270, %v271
    %v273 = vsel %vm159, %v157, -inf
    %v274 = vrot.slane %v273, 4
    %v275 = vmax.f32 %v273, %v274
    %v276 = vrot.slane %v275, 2
    %v277 = vmax.f32 %v275, %v276
    %v278 = vrot.slane %v277, 1
    %v279 = vmax.f32 %v277, %v278
    %v280 = vsel %vm159, %v158, -inf
    %v281 = vrot.slane %v280, 4
    %v282 = vmax.f32 %v280, %v281
    %v283 = vrot.slane %v282, 2
    %v284 = vmax.f32 %v282, %v283
    %v285 = vrot.slane %v284, 1
    %v286 = vmax.f32 %v284, %v285
    %v287 = vld [vmem:[#allocation5] sm:$0xff]
    %v288 = vld [vmem:[#allocation5 + $0x8] sm:$0xff]
    %v289 = vld [vmem:[#allocation5 + $0x10] sm:$0xff]
    %v290 = vld [vmem:[#allocation5 + $0x18] sm:$0xff]
    %v291 = vld [vmem:[#allocation7] sm:$0xff]
    %v292 = vld [vmem:[#allocation7 + $0x8] sm:$0xff]
    %v293 = vld [vmem:[#allocation7 + $0x10] sm:$0xff]
    %v294 = vld [vmem:[#allocation7 + $0x18] sm:$0xff]
    %vm303 = vcmask 1041409
    %v304 = vsel %vm303, %v224, %v223
    %vm305 = vcmask 1042434
    %v306 = vsel %vm305, %v225, %v304
    %vm307 = vcmask 1043459
    %v308 = vsel %vm307, %v226, %v306
    %vm309 = vcmask 1044484
    %v310 = vsel %vm309, %v227, %v308
    %vm311 = vcmask 1045509
    %v312 = vsel %vm311, %v228, %v310
    %vm313 = vcmask 1046534
    %v314 = vsel %vm313, %v229, %v312
    %vm315 = vcmask 1047559
    %v316 = vsel %vm315, %v230, %v314
    %v317 = vsel %vm159, %v316, 0
    %319 = vmatpush.msra.mxu0 0.0
    %320 = vmatpush.msra.mxu0 0.0
    %321 = vmatpush.msra.mxu0 0.0
    %322 = vmatpush.msra.mxu0 0.0
    %323 = vmatpush.msra.mxu0 0.0
    %324 = vmatpush.msra.mxu0 0.0
    %325 = vmatpush.msra.mxu0 0.0
    %326 = vmatpush.msra.mxu0 0.0
    %327 = vmatpush.msra.mxu0 0.0
    %328 = vmatpush.msra.mxu0 0.0
    %329 = vmatpush.msra.mxu0 0.0
    %330 = vmatpush.msra.mxu0 0.0
    %331 = vmatpush.msra.mxu0 %v294
    %332 = vmatpush.msra.mxu0 %v293
    %333 = vmatpush.msra.mxu0 %v292
    %334 = vmatpush.msra.mxu0 %v291
    %335 = vmatmul.f32.gmra.mxu0 %v317
    %v336 = vpop.f32.mrf.mxu0
    %v337 = vadd.f32 0.0, %v336
    %338 = vdwg.mxu0
    %v347 = vsel %vm303, %v244, %v237
    %v348 = vsel %vm305, %v251, %v347
    %v349 = vsel %vm307, %v258, %v348
    %v350 = vsel %vm309, %v265, %v349
    %v351 = vsel %vm311, %v272, %v350
    %v352 = vsel %vm313, %v279, %v351
    %v353 = vsel %vm315, %v286, %v352
    %v354 = vsel %vm159, %v353, 0
    %356 = vmatpush.msra.mxu0 0.0
    %357 = vmatpush.msra.mxu0 0.0
    %358 = vmatpush.msra.mxu0 0.0
    %359 = vmatpush.msra.mxu0 0.0
    %360 = vmatpush.msra.mxu0 0.0
    %361 = vmatpush.msra.mxu0 0.0
    %362 = vmatpush.msra.mxu0 0.0
    %363 = vmatpush.msra.mxu0 0.0
    %364 = vmatpush.msra.mxu0 0.0
    %365 = vmatpush.msra.mxu0 0.0
    %366 = vmatpush.msra.mxu0 0.0
    %367 = vmatpush.msra.mxu0 0.0
    %368 = vmatpush.msra.mxu0 %v290
    %369 = vmatpush.msra.mxu0 %v289
    %370 = vmatpush.msra.mxu0 %v288
    %371 = vmatpush.msra.mxu0 %v287
    %372 = vmatmul.f32.gmra.mxu0 %v354
    %v373 = vpop.f32.mrf.mxu0
    %v374 = vadd.f32 %v337, %v373
    %375 = vdwg.mxu0
    %v376 = vld [vmem:[%s3] sm:$0x1]
    %v378 = vperm.slane %v376, 0
    %v380 = vadd.f32 %v374, %v378
    %v381 = vmax.f32 %v380, 0.0
    %v382 = vld [vmem:[#allocation8] sm:$0xff]
    %v383 = vld [vmem:[#allocation8 + $0x8] sm:$0xff]
    %v384 = vld [vmem:[#allocation8 + $0x10] sm:$0xff]
    %v385 = vld [vmem:[#allocation8 + $0x18] sm:$0xff]
    %v386 = vld [vmem:[%s5] sm:$0x1]
    %v388 = vperm.slane %v386, 0
    %v391 = vsel %vm159, %v381, 0
    %393 = vmatpush.msra.mxu0 0.0
    %394 = vmatpush.msra.mxu0 0.0
    %395 = vmatpush.msra.mxu0 0.0
    %396 = vmatpush.msra.mxu0 0.0
    %397 = vmatpush.msra.mxu0 0.0
    %398 = vmatpush.msra.mxu0 0.0
    %399 = vmatpush.msra.mxu0 0.0
    %400 = vmatpush.msra.mxu0 0.0
    %401 = vmatpush.msra.mxu0 0.0
    %402 = vmatpush.msra.mxu0 0.0
    %403 = vmatpush.msra.mxu0 0.0
    %404 = vmatpush.msra.mxu0 0.0
    %405 = vmatpush.msra.mxu0 %v385
    %406 = vmatpush.msra.mxu0 %v384
    %407 = vmatpush.msra.mxu0 %v383
    %408 = vmatpush.msra.mxu0 %v382
    %409 = vmatmul.f32.gmra.mxu0 %v391
    %v410 = vpop.f32.mrf.mxu0
    %v411 = vadd.f32 %v388, %v410
    %412 = vdwg.mxu0
    %v413 = vmax.f32 %v411, 0.0
    %v414 = vld [vmem:[#allocation10] sm:$0xff]
    %v415 = vld [vmem:[#allocation10 + $0x8] sm:$0xff]
    %v416 = vld [vmem:[#allocation10 + $0x10] sm:$0xff]
    %v417 = vld [vmem:[#allocation10 + $0x18] sm:$0xff]
    %v418 = vld [vmem:[%s7] sm:$0x1]
    %v420 = vperm.slane %v418, 0
    %v423 = vsel %vm159, %v413, 0
    %425 = vmatpush.msra.mxu0 0.0
    %426 = vmatpush.msra.mxu0 0.0
    %427 = vmatpush.msra.mxu0 0.0
    %428 = vmatpush.msra.mxu0 0.0
    %429 = vmatpush.msra.mxu0 0.0
    %430 = vmatpush.msra.mxu0 0.0
    %431 = vmatpush.msra.mxu0 0.0
    %432 = vmatpush.msra.mxu0 0.0
    %433 = vmatpush.msra.mxu0 0.0
    %434 = vmatpush.msra.mxu0 0.0
    %435 = vmatpush.msra.mxu0 0.0
    %436 = vmatpush.msra.mxu0 0.0
    %437 = vmatpush.msra.mxu0 %v417
    %438 = vmatpush.msra.mxu0 %v416
    %439 = vmatpush.msra.mxu0 %v415
    %440 = vmatpush.msra.mxu0 %v414
    %441 = vmatmul.f32.gmra.mxu0 %v423
    %v442 = vpop.f32.mrf.mxu0
    %v443 = vadd.f32 %v420, %v442
    %444 = vdwg.mxu0
    %v445 = vmax.f32 %v443, 0.0
    %v446 = vld [vmem:[#allocation11] sm:$0xff]
    %v447 = vld [vmem:[#allocation11 + $0x8] sm:$0xff]
    %v448 = vld [vmem:[#allocation11 + $0x10] sm:$0xff]
    %v449 = vld [vmem:[#allocation11 + $0x18] sm:$0xff]
    %v450 = vld [vmem:[%s9] sm:$0x1]
    %v452 = vperm.slane %v450, 0
    %v455 = vsel %vm159, %v445, 0
    %457 = vmatpush.msra.mxu0 0.0
    %458 = vmatpush.msra.mxu0 0.0
    %459 = vmatpush.msra.mxu0 0.0
    %460 = vmatpush.msra.mxu0 0.0
    %461 = vmatpush.msra.mxu0 0.0
    %462 = vmatpush.msra.mxu0 0.0
    %463 = vmatpush.msra.mxu0 0.0
    %464 = vmatpush.msra.mxu0 0.0
    %465 = vmatpush.msra.mxu0 0.0
    %466 = vmatpush.msra.mxu0 0.0
    %467 = vmatpush.msra.mxu0 0.0
    %468 = vmatpush.msra.mxu0 0.0
    %469 = vmatpush.msra.mxu0 %v449
    %470 = vmatpush.msra.mxu0 %v448
    %471 = vmatpush.msra.mxu0 %v447
    %472 = vmatpush.msra.mxu0 %v446
    %473 = vmatmul.f32.gmra.mxu0 %v455
    %v474 = vpop.f32.mrf.mxu0
    %v475 = vadd.f32 %v452, %v474
    %476 = vdwg.mxu0
    %v477 = vmax.f32 %v475, 0.0
    %v478 = vld [vmem:[#allocation13] sm:$0xff]
    %v479 = vld [vmem:[#allocation13 + $0x8] sm:$0xff]
    %v480 = vld [vmem:[#allocation13 + $0x10] sm:$0xff]
    %v481 = vld [vmem:[#allocation13 + $0x18] sm:$0xff]
    %v482 = vld [vmem:[%s11] sm:$0x1]
    %v484 = vperm.slane %v482, 0
    %v487 = vsel %vm159, %v477, 0
    %489 = vmatpush.msra.mxu0 0.0
    %490 = vmatpush.msra.mxu0 0.0
    %491 = vmatpush.msra.mxu0 0.0
    %492 = vmatpush.msra.mxu0 0.0
    %493 = vmatpush.msra.mxu0 0.0
    %494 = vmatpush.msra.mxu0 0.0
    %495 = vmatpush.msra.mxu0 0.0
    %496 = vmatpush.msra.mxu0 0.0
    %497 = vmatpush.msra.mxu0 0.0
    %498 = vmatpush.msra.mxu0 0.0
    %499 = vmatpush.msra.mxu0 0.0
    %500 = vmatpush.msra.mxu0 0.0
    %501 = vmatpush.msra.mxu0 %v481
    %502 = vmatpush.msra.mxu0 %v480
    %503 = vmatpush.msra.mxu0 %v479
    %504 = vmatpush.msra.mxu0 %v478
    %505 = vmatmul.f32.gmra.mxu0 %v487
    %v506 = vpop.f32.mrf.mxu0
    %v507 = vadd.f32 %v484, %v506
    %508 = vdwg.mxu0
    %v509 = vtanh.pop %v507
    %510 = vst [vmem:[#allocation14] sm:$0xff] %v509
    // Predicated region
    $region78: #{tpu_custom_call.1} parent=1 // pred_check
      _
    $region79: #{tpu_custom_call.1} parent=1 // pred_check_branch
      %512 = sbr.rel (0) target = $region81
    $region80: #{tpu_custom_call.1} parent=1 // pred_region
      %514 = vsyncadd [#allocation4], 0
      %s516 = sshll.u32 [#allocation14], 4
      %s517 = int_to_ptr.vmem [resolvable:$true] %s516
      %s518 = sshll.u32 %s12, 4
      %s519 = int_to_ptr.hbm [resolvable:$true] %s518
      %521 = dma.vmem_to_hbm [thread:$0]  %s517, 128, %s519, [#allocation4]
    $region81: #{tpu_custom_call.1} parent=1 // pred_fallthru
      _
    // Predicated region
    $region82: #{tpu_custom_call.1} parent=1 // pred_check
      _
    $region83: #{tpu_custom_call.1} parent=1 // pred_check_branch
      %523 = sbr.rel (0) target = $region85
    $region84: #{tpu_custom_call.1} parent=1 // pred_region
      %525 = dma.done [#allocation4], 128
    $region85: #{tpu_custom_call.1} parent=1 // pred_fallthru
      _
    %526 = vsyncpa [#allocation3], 1
    %527 = vsyncpa [#allocation6], 1
    %528 = vsyncpa [#allocation9], 1
    %529 = vsyncpa [#allocation12], 1
    %530 = vsyncpa [#allocation4], 1

</llo_original>
